<compile_context>
chip_gen: v5e
topology: v5e:2x2
jax: 0.10.0
libtpu: 0.0.40
codegen_flags: <defaults>
</compile_context>

<pallas_src>
import functools

import jax
import jax.numpy as jnp
from jax.experimental import pallas as pl
from jax.experimental.pallas import tpu as pltpu

LEAKY_SLOPE = 0.2
LANE = 128
SUBLANE = 8


def _round_up(x, m):
    return (x + m - 1) // m * m


def _disc_kernel(shared_in_dims, x_ref, ws_ref, bs_ref, wh_ref, bh_ref, o_ref):
    """One batch tile through the shared MLP + fused attribute heads.

    x_ref : (tb, input_dim)      f32 activations (batch tile)
    ws_ref: (L, max_in, hidden)  stacked shared weights (zero-padded rows)
    bs_ref: (L, 1, hidden)       stacked shared biases
    wh_ref: (hidden, out_pad)    fused + lane-padded head weights
    bh_ref: (1, out_pad)         fused + lane-padded head biases
    o_ref : (tb, out_pad)        lane-dense fused output
    """
    w_dtype = ws_ref.dtype
    h = x_ref[...].astype(jnp.float32)

    # Shared MLP: Linear -> LeakyReLU(0.2) -> Dropout(identity in eval).
    for i, d_in in enumerate(shared_in_dims):
        w = ws_ref[i]                              # (max_in, hidden), static index
        if d_in != w.shape[0]:
            w = w[:d_in, :]                        # static slice to real fan-in
        h = jnp.dot(h.astype(w_dtype), w, preferred_element_type=jnp.float32)
        h = h + bs_ref[i].astype(jnp.float32)      # (1, hidden) broadcast, f32
        h = jnp.where(h >= 0, h, LEAKY_SLOPE * h)  # LeakyReLU in f32 on the VPU

    # All attribute heads in a single MXU pass + one lane-dense store.
    o = jnp.dot(h.astype(w_dtype), wh_ref[...], preferred_element_type=jnp.float32)
    o = o + bh_ref[...].astype(jnp.float32)
    o_ref[...] = o.astype(o_ref.dtype)


def multi_attr_discriminator(x, shared_params, head_params, *,
                             block_batch=256, param_dtype=jnp.float32):
    """x: (batch, input_dim) f32.
    shared_params: list of (W:(in,out), b:(1,out)) for the shared layers
                   (weights pre-transposed vs. nn.Linear, i.e. y = x @ W + b).
    head_params:   list of (W:(hidden,n_attr_i), b:(1,n_attr_i)) per head.
    Returns list of (batch, n_attr_i) f32 arrays."""
    batch, input_dim = x.shape
    num_shared = len(shared_params)
    hidden = shared_params[0][0].shape[1]
    shared_in_dims = tuple(int(w.shape[0]) for w, _ in shared_params)
    max_in = max(shared_in_dims)

    # --- pack shared layers: one stacked weight DMA + one stacked bias DMA ---
    ws = jnp.zeros((num_shared, max_in, hidden), param_dtype)
    bs = jnp.zeros((num_shared, 1, hidden), param_dtype)
    for i, (w, b) in enumerate(shared_params):
        ws = ws.at[i, : w.shape[0], :].set(w.astype(param_dtype))
        bs = bs.at[i, :, :].set(b.reshape(1, hidden).astype(param_dtype))

    # --- fuse heads: one (hidden, out_pad) matmul, lane-dense (128-mult) output ---
    head_sizes = [int(w.shape[1]) for w, _ in head_params]
    total_out = sum(head_sizes)
    out_pad = _round_up(max(total_out, LANE), LANE)
    wh = jnp.zeros((hidden, out_pad), param_dtype)
    bh = jnp.zeros((1, out_pad), param_dtype)
    off = 0
    for (w, b), n in zip(head_params, head_sizes):
        wh = wh.at[:, off:off + n].set(w.astype(param_dtype))
        bh = bh.at[:, off:off + n].set(b.reshape(1, n).astype(param_dtype))
        off += n

    # --- batch tiling: grid over batch; weights stay VMEM-resident across steps ---
    tb = min(_round_up(batch, SUBLANE), _round_up(block_batch, SUBLANE))
    b_pad = _round_up(batch, tb)
    if b_pad != batch:
        x = jnp.pad(x, ((0, b_pad - batch), (0, 0)))
    grid = (b_pad // tb,)

    kernel = functools.partial(_disc_kernel, shared_in_dims)

    out = pl.pallas_call(
        kernel,
        out_shape=jax.ShapeDtypeStruct((b_pad, out_pad), jnp.float32),
        grid=grid,
        in_specs=[
            pl.BlockSpec((tb, input_dim), lambda i: (i, 0)),  # batch tile of x
            pl.BlockSpec(ws.shape, lambda i: (0, 0, 0)),      # resident weights
            pl.BlockSpec(bs.shape, lambda i: (0, 0, 0)),
            pl.BlockSpec(wh.shape, lambda i: (0, 0)),
            pl.BlockSpec(bh.shape, lambda i: (0, 0)),
        ],
        out_specs=pl.BlockSpec((tb, out_pad), lambda i: (i, 0)),
        compiler_params=pltpu.CompilerParams(
            dimension_semantics=("parallel",)),
    )(x, ws, bs, wh, bh)

    # --- split fused lane-dense output back into per-head arrays (cheap slices) ---
    out = out[:batch]
    outs = []
    off = 0
    for n in head_sizes:
        outs.append(out[:, off:off + n])
        off += n
    return outs


def init_params(key, input_dim, dis_layers, dis_hidden_dim, attr_sizes):
    """Deterministic synthetic init mirroring the nn.Module shapes."""
    shared_params = []
    for i in range(dis_layers):
        in_dim = input_dim if i == 0 else dis_hidden_dim
        key, kw, kb = jax.random.split(key, 3)
        w = jax.random.normal(kw, (in_dim, dis_hidden_dim), jnp.float32) * 0.05
        b = jax.random.normal(kb, (1, dis_hidden_dim), jnp.float32) * 0.05
        shared_params.append((w, b))

    head_params = []
    for n in attr_sizes:
        key, kw, kb = jax.random.split(key, 3)
        w = jax.random.normal(kw, (dis_hidden_dim, n), jnp.float32) * 0.05
        b = jax.random.normal(kb, (1, n), jnp.float32) * 0.05
        head_params.append((w, b))
    return shared_params, head_params


def reference_forward(x, shared_params, head_params):
    h = x
    for w, b in shared_params:
        h = h @ w + b
        h = jnp.where(h >= 0, h, LEAKY_SLOPE * h)
    return [h @ w + b for w, b in head_params]


if __name__ == "__main__":
    # Module hyperparameters (small, consistent with the forward pass):
    #   hidden_dim=32 (-> input_dim=32), dis_layers=2, dis_hidden_dim=64,
    #   attr_values with two attributes of 2 and 3 values, dis_dropout=0.0 (eval).
    input_dim = 32
    dis_layers = 2
    dis_hidden_dim = 64
    attr_sizes = [2, 3]

    key = jax.random.PRNGKey(0)
    shared_params, head_params = init_params(
        key, input_dim, dis_layers, dis_hidden_dim, attr_sizes)

    # Test 1: single grid step (batch = 8).
    key, kx = jax.random.split(key)
    x = jax.random.normal(kx, (8, input_dim), jnp.float32)
    outs = multi_attr_discriminator(x, shared_params, head_params)
    outs = [jax.block_until_ready(o) for o in outs]
    refs = reference_forward(x, shared_params, head_params)
    for o, r in zip(outs, refs):
        assert o.shape == r.shape, (o.shape, r.shape)
        assert jnp.allclose(o, r, atol=1e-4, rtol=1e-4), float(jnp.max(jnp.abs(o - r)))

    # Test 2: multi-step parallel batch grid with batch padding (batch = 20, tile = 8).
    key, kx = jax.random.split(key)
    x2 = jax.random.normal(kx, (20, input_dim), jnp.float32)
    outs2 = multi_attr_discriminator(x2, shared_params, head_params, block_batch=8)
    outs2 = [jax.block_until_ready(o) for o in outs2]
    refs2 = reference_forward(x2, shared_params, head_params)
    for o, r in zip(outs2, refs2):
        assert o.shape == r.shape, (o.shape, r.shape)
        assert jnp.allclose(o, r, atol=1e-4, rtol=1e-4), float(jnp.max(jnp.abs(o - r)))

    print("KERNEL_OK")
</pallas_src>

<mosaic_0001>
module attributes {stable_mosaic.version = 11 : i64} {
  func.func @_disc_kernel(%arg0: i32, %arg1: memref<8x32xf32, #tpu.memory_space<vmem>>, %arg2: memref<2x64x64xf32, #tpu.memory_space<vmem>>, %arg3: memref<2x1x64xf32, #tpu.memory_space<vmem>>, %arg4: memref<64x128xf32, #tpu.memory_space<vmem>>, %arg5: memref<1x128xf32, #tpu.memory_space<vmem>>, %arg6: memref<8x128xf32, #tpu.memory_space<vmem>>) attributes {dimension_semantics = [#tpu.dimension_semantics<parallel>], iteration_bounds = array<i64: 1>, scalar_prefetch = 0 : i64, scratch_operands = 0 : i64, tpu.core_type = #tpu.core_type<tc>, window_params = [{transform_indices = @transform_0, window_bounds = array<i64: 8, 32>}, {pipeline_mode = #tpu.pipeline_mode<synchronous>, transform_indices = @transform_1, window_bounds = array<i64: 2, 64, 64>}, {pipeline_mode = #tpu.pipeline_mode<synchronous>, transform_indices = @transform_2, window_bounds = array<i64: 2, 1, 64>}, {pipeline_mode = #tpu.pipeline_mode<synchronous>, transform_indices = @transform_3, window_bounds = array<i64: 64, 128>}, {pipeline_mode = #tpu.pipeline_mode<synchronous>, transform_indices = @transform_4, window_bounds = array<i64: 1, 128>}, {transform_indices = @transform_5, window_bounds = array<i64: 8, 128>}]} {
    %c0 = arith.constant 0 : index
    %c0_0 = arith.constant 0 : index
    %0 = vector.load %arg1[%c0, %c0_0] : memref<8x32xf32, #tpu.memory_space<vmem>>, vector<8x32xf32>
    %c0_1 = arith.constant 0 : index
    %c0_2 = arith.constant 0 : index
    %c0_3 = arith.constant 0 : index
    %1 = vector.load %arg2[%c0_1, %c0_2, %c0_3] : memref<2x64x64xf32, #tpu.memory_space<vmem>>, vector<1x64x64xf32>
    %2 = vector.shape_cast %1 : vector<1x64x64xf32> to vector<64x64xf32>
    %3 = vector.extract_strided_slice %2 {offsets = [0, 0], sizes = [32, 64], strides = [1, 1]} : vector<64x64xf32> to vector<32x64xf32>
    %cst = arith.constant dense<0.000000e+00> : vector<8x64xf32>
    %4 = tpu.matmul %0, %3, %cst {dimension_numbers = #tpu.dot_dimension_numbers<[1], [0], [0], [1], [0, 0, 1, 1], [], []>} : vector<8x32xf32>, vector<32x64xf32>, vector<8x64xf32> -> vector<8x64xf32>
    %c0_4 = arith.constant 0 : index
    %c0_5 = arith.constant 0 : index
    %c0_6 = arith.constant 0 : index
    %5 = vector.load %arg3[%c0_4, %c0_5, %c0_6] : memref<2x1x64xf32, #tpu.memory_space<vmem>>, vector<1x1x64xf32>
    %6 = vector.shape_cast %5 : vector<1x1x64xf32> to vector<1x64xf32>
    %7 = vector.broadcast %6 : vector<1x64xf32> to vector<8x64xf32>
    %8 = arith.addf %4, %7 : vector<8x64xf32>
    %cst_7 = arith.constant 0.000000e+00 : f32
    %9 = vector.broadcast %cst_7 : f32 to vector<8x64xf32>
    %10 = arith.cmpf oge, %8, %9 : vector<8x64xf32>
    %cst_8 = arith.constant 2.000000e-01 : f32
    %11 = vector.broadcast %cst_8 : f32 to vector<8x64xf32>
    %12 = arith.mulf %11, %8 : vector<8x64xf32>
    %13 = arith.select %10, %8, %12 : vector<8x64xi1>, vector<8x64xf32>
    %c1 = arith.constant 1 : index
    %c0_9 = arith.constant 0 : index
    %c0_10 = arith.constant 0 : index
    %14 = vector.load %arg2[%c1, %c0_9, %c0_10] : memref<2x64x64xf32, #tpu.memory_space<vmem>>, vector<1x64x64xf32>
    %15 = vector.shape_cast %14 : vector<1x64x64xf32> to vector<64x64xf32>
    %cst_11 = arith.constant dense<0.000000e+00> : vector<8x64xf32>
    %16 = tpu.matmul %13, %15, %cst_11 {dimension_numbers = #tpu.dot_dimension_numbers<[1], [0], [0], [1], [0, 0, 1, 1], [], []>} : vector<8x64xf32>, vector<64x64xf32>, vector<8x64xf32> -> vector<8x64xf32>
    %c1_12 = arith.constant 1 : index
    %c0_13 = arith.constant 0 : index
    %c0_14 = arith.constant 0 : index
    %17 = vector.load %arg3[%c1_12, %c0_13, %c0_14] : memref<2x1x64xf32, #tpu.memory_space<vmem>>, vector<1x1x64xf32>
    %18 = vector.shape_cast %17 : vector<1x1x64xf32> to vector<1x64xf32>
    %19 = vector.broadcast %18 : vector<1x64xf32> to vector<8x64xf32>
    %20 = arith.addf %16, %19 : vector<8x64xf32>
    %cst_15 = arith.constant 0.000000e+00 : f32
    %21 = vector.broadcast %cst_15 : f32 to vector<8x64xf32>
    %22 = arith.cmpf oge, %20, %21 : vector<8x64xf32>
    %cst_16 = arith.constant 2.000000e-01 : f32
    %23 = vector.broadcast %cst_16 : f32 to vector<8x64xf32>
    %24 = arith.mulf %23, %20 : vector<8x64xf32>
    %25 = arith.select %22, %20, %24 : vector<8x64xi1>, vector<8x64xf32>
    %c0_17 = arith.constant 0 : index
    %c0_18 = arith.constant 0 : index
    %26 = vector.load %arg4[%c0_17, %c0_18] : memref<64x128xf32, #tpu.memory_space<vmem>>, vector<64x128xf32>
    %cst_19 = arith.constant dense<0.000000e+00> : vector<8x128xf32>
    %27 = tpu.matmul %25, %26, %cst_19 {dimension_numbers = #tpu.dot_dimension_numbers<[1], [0], [0], [1], [0, 0, 1, 1], [], []>} : vector<8x64xf32>, vector<64x128xf32>, vector<8x128xf32> -> vector<8x128xf32>
    %c0_20 = arith.constant 0 : index
    %c0_21 = arith.constant 0 : index
    %28 = vector.load %arg5[%c0_20, %c0_21] : memref<1x128xf32, #tpu.memory_space<vmem>>, vector<1x128xf32>
    %29 = vector.broadcast %28 : vector<1x128xf32> to vector<8x128xf32>
    %30 = arith.addf %27, %29 : vector<8x128xf32>
    %c0_22 = arith.constant 0 : index
    %c0_23 = arith.constant 0 : index
    %31 = vector.load %arg6[%c0_22, %c0_23] : memref<8x128xf32, #tpu.memory_space<vmem>>, vector<8x128xf32>
    tpu.vector_store %arg6[%c0_22, %c0_23], %30 {strides = array<i32>} : memref<8x128xf32, #tpu.memory_space<vmem>>, vector<8x128xf32>,
    return
  }
  func.func @transform_0(%arg0: i32) -> (i32, i32) {
    %c0_i32 = arith.constant 0 : i32
    %c0_i32_0 = arith.constant 0 : i32
    return %arg0, %c0_i32 : i32, i32
  }
  func.func @transform_1(%arg0: i32) -> (i32, i32, i32) {
    %c0_i32 = arith.constant 0 : i32
    %c0_i32_0 = arith.constant 0 : i32
    %c0_i32_1 = arith.constant 0 : i32
    %c0_i32_2 = arith.constant 0 : i32
    return %c0_i32, %c0_i32_0, %c0_i32_1 : i32, i32, i32
  }
  func.func @transform_2(%arg0: i32) -> (i32, i32, i32) {
    %c0_i32 = arith.constant 0 : i32
    %c0_i32_0 = arith.constant 0 : i32
    %c0_i32_1 = arith.constant 0 : i32
    %c0_i32_2 = arith.constant 0 : i32
    return %c0_i32, %c0_i32_0, %c0_i32_1 : i32, i32, i32
  }
  func.func @transform_3(%arg0: i32) -> (i32, i32) {
    %c0_i32 = arith.constant 0 : i32
    %c0_i32_0 = arith.constant 0 : i32
    %c0_i32_1 = arith.constant 0 : i32
    return %c0_i32, %c0_i32_0 : i32, i32
  }
  func.func @transform_4(%arg0: i32) -> (i32, i32) {
    %c0_i32 = arith.constant 0 : i32
    %c0_i32_0 = arith.constant 0 : i32
    %c0_i32_1 = arith.constant 0 : i32
    return %c0_i32, %c0_i32_0 : i32, i32
  }
  func.func @transform_5(%arg0: i32) -> (i32, i32) {
    %c0_i32 = arith.constant 0 : i32
    %c0_i32_0 = arith.constant 0 : i32
    return %arg0, %c0_i32 : i32, i32
  }
}

</mosaic_0001>

<llo_original>
// kernel: tpu_custom_call.1
$region0: #{tpu_custom_call.1}
  #allocation0 [shape = 'u32[]', space=smem, size = 0x4, offset = 0x4, fixed_abs, tag = 'smem constant byte address 0x4 - core index']
  #allocation1 [shape = 'u32[72,128]{1,0:T(1,128)}', space=vmem, size = 0x9000, scoped, tag = 'internal scratch']
  %s0 = inlined_call_operand.hbm [shape: f32[8,32], index: 0, kind: input, shape index: {}]
  %s1 = inlined_call_operand.hbm [shape: f32[2,64,64], index: 1, kind: input, shape index: {}]
  %s2 = inlined_call_operand.hbm [shape: f32[2,1,64], index: 2, kind: input, shape index: {}]
  %s3 = inlined_call_operand.hbm [shape: f32[64,128], index: 3, kind: input, shape index: {}]
  %s4 = inlined_call_operand.vmem [shape: f32[1,128], index: 4, kind: input, shape index: {}]
  %s5 = inlined_call_operand.hbm [shape: f32[8,128], index: 5, kind: output, shape index: {}]
  %s6 = sld [smem:[#allocation0]]
  $region46: #{tpu_custom_call.1} parent=0
    _
  %s8 = ssub.s32 1, %s6
  %s9 = scalar_select 0, %s8, %s6
  $region1: #{tpu_custom_call.1} parent=0
    #allocation2 [shape = 'u8[4096]{0}', space=vmem, size = 0x1000, scoped, tag = 'input window, operand 0, single buffered']
    #allocation3 [shape = 's32[1]{0}', space=sflag, size = 0x4, scoped, tag = 'scoped memory for tpu_custom_call.1']
    #allocation4 [shape = 's32[1]{0}', space=sflag, size = 0x4, scoped, tag = 'scoped memory for tpu_custom_call.1']
    #allocation5 [shape = 'u8[65536]{0}', space=vmem, size = 0x10000, scoped, tag = 'input window, operand 1, single buffered']
    #allocation6 [shape = 's32[1]{0}', space=sflag, size = 0x4, scoped, tag = 'scoped memory for tpu_custom_call.1']
    #allocation7 [shape = 'u8[1024]{0}', space=vmem, size = 0x400, scoped, tag = 'input window, operand 2, single buffered']
    #allocation8 [shape = 'u8[32768]{0}', space=vmem, size = 0x8000, scoped, tag = 'input window, operand 3, single buffered']
    #allocation9 [shape = 's32[1]{0}', space=sflag, size = 0x4, scoped, tag = 'scoped memory for tpu_custom_call.1']
    #allocation10 [shape = 'u8[4096]{0}', space=vmem, size = 0x1000, scoped, tag = 'output window, operand 0, single buffered']
    %10 = vsyncpa [#allocation3], 0
    %11 = vsyncpa [#allocation6], 0
    %12 = vsyncpa [#allocation9], 0
    %13 = vsyncpa [#allocation4], 0
    // Predicated region
    $region2: #{tpu_custom_call.1} parent=1 // pred_check
      _
    $region3: #{tpu_custom_call.1} parent=1 // pred_check_branch
      %15 = sbr.rel (0) target = $region5
    $region4: #{tpu_custom_call.1} parent=1 // pred_region
      %17 = vsyncadd [#allocation3], 0
      %s19 = sshll.u32 %s0, 4
      %s20 = int_to_ptr.hbm [resolvable:$true] %s19
      %s21 = sshll.u32 [#allocation2], 4
      %s22 = int_to_ptr.vmem [resolvable:$true] %s21
      %24 = dma.hbm_to_vmem [thread:$0]  %s20, 128, %s22, [#allocation3]
    $region5: #{tpu_custom_call.1} parent=1 // pred_fallthru
      _
    // Predicated region
    $region6: #{tpu_custom_call.1} parent=1 // pred_check
      _
    $region7: #{tpu_custom_call.1} parent=1 // pred_check_branch
      %26 = sbr.rel (0) target = $region9
    $region8: #{tpu_custom_call.1} parent=1 // pred_region
      %28 = vsyncadd [#allocation6], 0
      %s29 = sshll.u32 %s1, 4
      %s30 = int_to_ptr.hbm [resolvable:$true] %s29
      %s31 = sshll.u32 [#allocation5], 4
      %s32 = int_to_ptr.vmem [resolvable:$true] %s31
      %37 = dma.hbm_to_vmem [thread:$0]  %s30, 2048, %s32, [#allocation6], 128, 128, 8
    $region9: #{tpu_custom_call.1} parent=1 // pred_fallthru
      _
    // Predicated region
    $region10: #{tpu_custom_call.1} parent=1 // pred_check
      _
    $region11: #{tpu_custom_call.1} parent=1 // pred_check_branch
      %39 = sbr.rel (0) target = $region13
    $region12: #{tpu_custom_call.1} parent=1 // pred_region
      %41 = vsyncadd [#allocation6], 0
      %s42 = sshll.u32 %s2, 4
      %s43 = int_to_ptr.hbm [resolvable:$true] %s42
      %s44 = sshll.u32 [#allocation7], 4
      %s45 = int_to_ptr.vmem [resolvable:$true] %s44
      %50 = dma.hbm_to_vmem [thread:$0]  %s43, 32, %s45, [#allocation6], 16, 16, 1
    $region13: #{tpu_custom_call.1} parent=1 // pred_fallthru
      _
    // Predicated region
    $region14: #{tpu_custom_call.1} parent=1 // pred_check
      _
    $region15: #{tpu_custom_call.1} parent=1 // pred_check_branch
      %52 = sbr.rel (0) target = $region17
    $region16: #{tpu_custom_call.1} parent=1 // pred_region
      %54 = vsyncadd [#allocation9], 0
      %s55 = sshll.u32 %s3, 4
      %s56 = int_to_ptr.hbm [resolvable:$true] %s55
      %s57 = sshll.u32 [#allocation8], 4
      %s58 = int_to_ptr.vmem [resolvable:$true] %s57
      %63 = dma.hbm_to_vmem [thread:$0]  %s56, 1024, %s58, [#allocation9], 128, 128, 8
    $region17: #{tpu_custom_call.1} parent=1 // pred_fallthru
      _
    // Predicated region
    $region18: #{tpu_custom_call.1} parent=1 // pred_check
      _
    $region19: #{tpu_custom_call.1} parent=1 // pred_check_branch
      %65 = sbr.rel (0) target = $region21
    $region20: #{tpu_custom_call.1} parent=1 // pred_region
      _
    $region21: #{tpu_custom_call.1} parent=1 // pred_fallthru
      _
    // Predicated region
    $region22: #{tpu_custom_call.1} parent=1 // pred_check
      _
    $region23: #{tpu_custom_call.1} parent=1 // pred_check_branch
      %67 = sbr.rel (0) target = $region25
    $region24: #{tpu_custom_call.1} parent=1 // pred_region
      %69 = dma.done [#allocation3], 128
    $region25: #{tpu_custom_call.1} parent=1 // pred_fallthru
      _
    // Predicated region
    $region26: #{tpu_custom_call.1} parent=1 // pred_check
      _
    $region27: #{tpu_custom_call.1} parent=1 // pred_check_branch
      %71 = sbr.rel (0) target = $region29
    $region28: #{tpu_custom_call.1} parent=1 // pred_region
      %73 = dma.done [#allocation6], 2048
    $region29: #{tpu_custom_call.1} parent=1 // pred_fallthru
      _
    // Predicated region
    $region30: #{tpu_custom_call.1} parent=1 // pred_check
      _
    $region31: #{tpu_custom_call.1} parent=1 // pred_check_branch
      %75 = sbr.rel (0) target = $region33
    $region32: #{tpu_custom_call.1} parent=1 // pred_region
      %77 = dma.done [#allocation6], 32
    $region33: #{tpu_custom_call.1} parent=1 // pred_fallthru
      _
    // Predicated region
    $region34: #{tpu_custom_call.1} parent=1 // pred_check
      _
    $region35: #{tpu_custom_call.1} parent=1 // pred_check_branch
      %79 = sbr.rel (0) target = $region37
    $region36: #{tpu_custom_call.1} parent=1 // pred_region
      %81 = dma.done [#allocation9], 1024
    $region37: #{tpu_custom_call.1} parent=1 // pred_fallthru
      _
    %v82 = vld [vmem:[#allocation2] sm:$0xff]
    %v83 = vld [vmem:[#allocation5] sm:$0xff]
    %v84 = vld [vmem:[#allocation5 + $0x8] sm:$0xff]
    %v85 = vld [vmem:[#allocation5 + $0x10] sm:$0xff]
    %v86 = vld [vmem:[#allocation5 + $0x18] sm:$0xff]
    %v87 = vld [vmem:[#allocation7] sm:$0x1]
    %v89 = vperm.slane %v87, 0
    %vm91 = vcmask 261120
    %v93 = vsel %vm91, %v82, 0
    %95 = vmatpush.msra.mxu0 0.0
    %96 = vmatpush.msra.mxu0 0.0
    %97 = vmatpush.msra.mxu0 0.0
    %98 = vmatpush.msra.mxu0 0.0
    %99 = vmatpush.msra.mxu0 0.0
    %100 = vmatpush.msra.mxu0 0.0
    %101 = vmatpush.msra.mxu0 0.0
    %102 = vmatpush.msra.mxu0 0.0
    %103 = vmatpush.msra.mxu0 0.0
    %104 = vmatpush.msra.mxu0 0.0
    %105 = vmatpush.msra.mxu0 0.0
    %106 = vmatpush.msra.mxu0 0.0
    %107 = vmatpush.msra.mxu0 %v86
    %108 = vmatpush.msra.mxu0 %v85
    %109 = vmatpush.msra.mxu0 %v84
    %110 = vmatpush.msra.mxu0 %v83
    %111 = vmatmul.f32.gmra.mxu0 %v93
    %v112 = vpop.f32.mrf.mxu0
    %v113 = vadd.f32 %v89, %v112
    %114 = vdwg.mxu0
    %vm115 = vcmp.ge.f32.partialorder %v113, 0.0
    %v116 = vmul.f32 %v113, 0.2
    %v117 = vsel %vm115, %v113, %v116
    %s118 = scalar_lea.vmem [#allocation5], 64
    %v119 = vld [vmem:[%s118] sm:$0xff]
    %v120 = vld [vmem:[%s118 + $0x8] sm:$0xff]
    %v121 = vld [vmem:[%s118 + $0x10] sm:$0xff]
    %v122 = vld [vmem:[%s118 + $0x18] sm:$0xff]
    %v123 = vld [vmem:[%s118 + $0x20] sm:$0xff]
    %v124 = vld [vmem:[%s118 + $0x28] sm:$0xff]
    %v125 = vld [vmem:[%s118 + $0x30] sm:$0xff]
    %v126 = vld [vmem:[%s118 + $0x38] sm:$0xff]
    %s127 = scalar_lea.vmem [#allocation7], 1
    %v128 = vld [vmem:[%s127] sm:$0x1]
    %v130 = vperm.slane %v128, 0
    %vm132 = vcmask 523264
    %v134 = vsel %vm132, %v117, 0
    %136 = vmatpush.msra.mxu0 0.0
    %137 = vmatpush.msra.mxu0 0.0
    %138 = vmatpush.msra.mxu0 0.0
    %139 = vmatpush.msra.mxu0 0.0
    %140 = vmatpush.msra.mxu0 0.0
    %141 = vmatpush.msra.mxu0 0.0
    %142 = vmatpush.msra.mxu0 0.0
    %143 = vmatpush.msra.mxu0 0.0
    %144 = vmatpush.msra.mxu0 %v126
    %145 = vmatpush.msra.mxu0 %v125
    %146 = vmatpush.msra.mxu0 %v124
    %147 = vmatpush.msra.mxu0 %v123
    %148 = vmatpush.msra.mxu0 %v122
    %149 = vmatpush.msra.mxu0 %v121
    %150 = vmatpush.msra.mxu0 %v120
    %151 = vmatpush.msra.mxu0 %v119
    %152 = vmatmul.f32.gmra.mxu0 %v134
    %v153 = vpop.f32.mrf.mxu0
    %v154 = vadd.f32 %v130, %v153
    %155 = vdwg.mxu0
    %vm156 = vcmp.ge.f32.partialorder %v154, 0.0
    %v157 = vmul.f32 %v154, 0.2
    %v158 = vsel %vm156, %v154, %v157
    %v159 = vld [vmem:[#allocation8] sm:$0xff]
    %v160 = vld [vmem:[#allocation8 + $0x8] sm:$0xff]
    %v161 = vld [vmem:[#allocation8 + $0x10] sm:$0xff]
    %v162 = vld [vmem:[#allocation8 + $0x18] sm:$0xff]
    %v163 = vld [vmem:[#allocation8 + $0x20] sm:$0xff]
    %v164 = vld [vmem:[#allocation8 + $0x28] sm:$0xff]
    %v165 = vld [vmem:[#allocation8 + $0x30] sm:$0xff]
    %v166 = vld [vmem:[#allocation8 + $0x38] sm:$0xff]
    %v167 = vld [vmem:[%s4] sm:$0x1]
    %v169 = vperm.slane %v167, 0
    %v172 = vsel %vm132, %v158, 0
    %174 = vmatpush.msra.mxu0 0.0
    %175 = vmatpush.msra.mxu0 0.0
    %176 = vmatpush.msra.mxu0 0.0
    %177 = vmatpush.msra.mxu0 0.0
    %178 = vmatpush.msra.mxu0 0.0
    %179 = vmatpush.msra.mxu0 0.0
    %180 = vmatpush.msra.mxu0 0.0
    %181 = vmatpush.msra.mxu0 0.0
    %182 = vmatpush.msra.mxu0 %v166
    %183 = vmatpush.msra.mxu0 %v165
    %184 = vmatpush.msra.mxu0 %v164
    %185 = vmatpush.msra.mxu0 %v163
    %186 = vmatpush.msra.mxu0 %v162
    %187 = vmatpush.msra.mxu0 %v161
    %188 = vmatpush.msra.mxu0 %v160
    %189 = vmatpush.msra.mxu0 %v159
    %190 = vmatmul.f32.gmra.mxu0 %v172
    %v191 = vpop.f32.mrf.mxu0
    %v192 = vadd.f32 %v169, %v191
    %193 = vdwg.mxu0
    %194 = vst [vmem:[#allocation10] sm:$0xff] %v192
    // Predicated region
    $region38: #{tpu_custom_call.1} parent=1 // pred_check
      _
    $region39: #{tpu_custom_call.1} parent=1 // pred_check_branch
      %196 = sbr.rel (0) target = $region41
    $region40: #{tpu_custom_call.1} parent=1 // pred_region
      %198 = vsyncadd [#allocation4], 0
      %s200 = sshll.u32 [#allocation10], 4
      %s201 = int_to_ptr.vmem [resolvable:$true] %s200
      %s202 = sshll.u32 %s5, 4
      %s203 = int_to_ptr.hbm [resolvable:$true] %s202
      %205 = dma.vmem_to_hbm [thread:$0]  %s201, 128, %s203, [#allocation4]
    $region41: #{tpu_custom_call.1} parent=1 // pred_fallthru
      _
    // Predicated region
    $region42: #{tpu_custom_call.1} parent=1 // pred_check
      _
    $region43: #{tpu_custom_call.1} parent=1 // pred_check_branch
      %207 = sbr.rel (0) target = $region45
    $region44: #{tpu_custom_call.1} parent=1 // pred_region
      %209 = dma.done [#allocation4], 128
    $region45: #{tpu_custom_call.1} parent=1 // pred_fallthru
      _
    %210 = vsyncpa [#allocation3], 1
    %211 = vsyncpa [#allocation6], 1
    %212 = vsyncpa [#allocation9], 1
    %213 = vsyncpa [#allocation4], 1

</llo_original>
